<compile_context>
chip_gen: v5e
topology: v5e:2x2
jax: 0.10.0
libtpu: 0.0.40
codegen_flags: <defaults>
</compile_context>

<pallas_src>
import jax
import jax.numpy as jnp
from jax.experimental import pallas as pl
from jax.experimental.pallas import tpu as pltpu


def _round_up(n, m):
    return pl.cdiv(n, m) * m


def joiner_kernel(x_ref, y_ref, w1x_ref, w1y_ref, b1_ref, w2_ref, b2_ref, o_ref):
    # x_ref : (TB, Dx)  activation tile (batch-major), streamed per grid step
    # y_ref : (TB, Dy)  activation tile, streamed per grid step
    # w1x   : (Dx, H)   fc1 weight rows for x  -- VMEM-resident (const index map)
    # w1y   : (Dy, H)   fc1 weight rows for y  -- VMEM-resident
    # b1    : (1, H)    fc1 bias               -- VMEM-resident
    # w2    : (1, H)    fc2 weight (row)       -- VMEM-resident
    # b2    : (1,)      fc2 bias               -- SMEM scalar
    # o_ref : (TB, 1)   output tile
    h = jnp.dot(x_ref[...], w1x_ref[...], preferred_element_type=jnp.float32)
    h = h + jnp.dot(y_ref[...], w1y_ref[...], preferred_element_type=jnp.float32)
    h = jnp.maximum(h + b1_ref[...], 0.0)                       # (TB, H), VPU
    # fc2 with a single output feature: VPU multiply + lane reduce (XLU slack),
    # no 1-column MXU matmul.  (TB, 1) store is cheap relative to input bytes.
    out = jnp.sum(h * w2_ref[...], axis=1, keepdims=True) + b2_ref[0]
    o_ref[...] = out.astype(o_ref.dtype)


def _pick_batch_tile(B, D, block_b, itemsize):
    """Pick (tb, b_pad): tb a multiple of 128 that divides b_pad >= B."""
    b128 = _round_up(B, 128)
    cap = _round_up(block_b, 128)
    # Keep 2x double-buffered activation tiles comfortably inside v5e's
    # 16 MiB default scoped VMEM (weights/bias/output are negligible).
    vmem_budget = 8 * 1024 * 1024
    cap = min(cap, max(128, (vmem_budget // (2 * D * itemsize)) // 128 * 128))
    # Give the grid >= 4 steps once the batch is large enough, so the
    # "parallel" axis actually splits across v7x's two TensorCores.
    if B >= 4096:
        cap = min(cap, max(1024, (b128 // 4) // 128 * 128))
    cap = max(128, min(cap, b128))
    units = b128 // 128
    # Prefer a tile that divides the 128-padded batch (no extra padding),
    # as long as it stays within 4x of the cap (keeps per-step DMA large).
    for u in range(cap // 128, 0, -1):
        if units % u == 0 and u * 128 * 4 >= cap:
            return u * 128, b128
    # No suitable divisor: use the cap and pad the batch up to whole tiles.
    return cap, _round_up(B, cap)


def joiner_forward(x, y, w1, b1, w2, b2, *, block_b=8192, use_pallas=None):
    """x: (B, Dx), y: (B, Dy), w1: (Dx+Dy, H), b1: (H,), w2: (H, 1), b2: (1,).

    Returns the Joiner output of shape (B, 1).
    """
    B, Dx = x.shape
    By, Dy = y.shape
    assert B == By, "x and y must share the batch dimension"
    D = Dx + Dy
    H = w1.shape[1]
    out_dtype = jnp.result_type(x.dtype, w1.dtype)

    if use_pallas is None:
        # Tiny batches: pallas_call fixed cost dominates; fused XLA is faster.
        use_pallas = B >= 1024
    if not use_pallas:
        return (jnp.maximum(x @ w1[:Dx] + y @ w1[Dx:] + b1, 0.0) @ w2
                + b2).astype(out_dtype)

    itemsize = max(jnp.dtype(x.dtype).itemsize, jnp.dtype(y.dtype).itemsize)
    tb, b_pad = _pick_batch_tile(B, D, block_b, itemsize)
    g = b_pad // tb

    if b_pad != B:
        # Only for ragged / tiny batches; 128-aligned batches with a divisor
        # tile go through with zero wrapper copies.
        x = jnp.pad(x, ((0, b_pad - B), (0, 0)))
        y = jnp.pad(y, ((0, b_pad - B), (0, 0)))

    w1x = w1[:Dx]                      # (Dx, H)
    w1y = w1[Dx:]                      # (Dy, H)
    b1_row = b1.reshape(1, H)          # (1, H)
    w2_row = w2.reshape(1, H)          # (1, H) -- same element order as (H, 1)
    b2_s = b2.reshape(1)               # (1,) SMEM scalar

    cost = pl.CostEstimate(
        flops=2 * B * D * H + 3 * B * H,
        transcendentals=0,
        bytes_accessed=(itemsize * B * D                                  # acts
                        + jnp.dtype(w1.dtype).itemsize * (D * H + 2 * H + 1)
                        + jnp.dtype(out_dtype).itemsize * B),             # out
    )

    out = pl.pallas_call(
        joiner_kernel,
        out_shape=jax.ShapeDtypeStruct((b_pad, 1), out_dtype),
        grid=(g,),
        in_specs=[
            pl.BlockSpec((tb, Dx), lambda i: (i, 0)),            # streamed x
            pl.BlockSpec((tb, Dy), lambda i: (i, 0)),            # streamed y
            pl.BlockSpec((Dx, H), lambda i: (0, 0)),             # resident w1[:Dx]
            pl.BlockSpec((Dy, H), lambda i: (0, 0)),             # resident w1[Dx:]
            pl.BlockSpec((1, H), lambda i: (0, 0)),              # resident b1
            pl.BlockSpec((1, H), lambda i: (0, 0)),              # resident w2
            pl.BlockSpec(memory_space=pltpu.MemorySpace.SMEM),   # b2 scalar
        ],
        out_specs=pl.BlockSpec((tb, 1), lambda i: (i, 0)),
        compiler_params=pltpu.CompilerParams(
            dimension_semantics=("parallel",),
        ),
        cost_estimate=cost,
    )(x, y, w1x, w1y, b1_row, w2_row, b2_s)

    return out[:B] if b_pad != B else out


if __name__ == "__main__":
    # Shapes consistent with the module: x_latent_dim=16, y_latent_dim=16,
    # hidden_dim=32, batch=2.
    B, Dx, Dy, H = 2, 16, 16, 32

    key = jax.random.PRNGKey(0)
    kx, ky, kw1, kb1, kw2, kb2 = jax.random.split(key, 6)

    x = jax.random.normal(kx, (B, Dx), dtype=jnp.float32)
    y = jax.random.normal(ky, (B, Dy), dtype=jnp.float32)

    # Deterministic parameter init (uniform, like nn.Linear's default scale).
    fan1 = Dx + Dy
    w1 = jax.random.uniform(kw1, (fan1, H), jnp.float32,
                            minval=-1.0 / fan1 ** 0.5, maxval=1.0 / fan1 ** 0.5)
    b1 = jax.random.uniform(kb1, (H,), jnp.float32,
                            minval=-1.0 / fan1 ** 0.5, maxval=1.0 / fan1 ** 0.5)
    w2 = jax.random.uniform(kw2, (H, 1), jnp.float32,
                            minval=-1.0 / H ** 0.5, maxval=1.0 / H ** 0.5)
    b2 = jax.random.uniform(kb2, (1,), jnp.float32,
                            minval=-1.0 / H ** 0.5, maxval=1.0 / H ** 0.5)

    def reference(xx, yy):
        return jnp.maximum(jnp.concatenate([xx, yy], axis=1) @ w1 + b1, 0.0) @ w2 + b2

    # Small-shape check, forcing the Pallas path (demo batch is tiny).
    out = joiner_forward(x, y, w1, b1, w2, b2, use_pallas=True)
    out = jax.block_until_ready(out)
    assert out.shape == (B, 1)
    assert jnp.allclose(out, reference(x, y), atol=1e-4, rtol=1e-5)

    # Multi-tile sanity check (exercises the production tiling: tb=1024, grid=4).
    Bb = 4096
    kxb, kyb = jax.random.split(jax.random.PRNGKey(1), 2)
    xb = jax.random.normal(kxb, (Bb, Dx), dtype=jnp.float32)
    yb = jax.random.normal(kyb, (Bb, Dy), dtype=jnp.float32)
    outb = jax.block_until_ready(joiner_forward(xb, yb, w1, b1, w2, b2))
    assert outb.shape == (Bb, 1)
    assert jnp.allclose(outb, reference(xb, yb), atol=1e-4, rtol=1e-5)

    print("KERNEL_OK")
</pallas_src>

<mosaic_0001>
module attributes {stable_mosaic.version = 11 : i64} {
  func.func @joiner_kernel(%arg0: i32, %arg1: memref<128x16xf32, #tpu.memory_space<vmem>>, %arg2: memref<128x16xf32, #tpu.memory_space<vmem>>, %arg3: memref<16x32xf32, #tpu.memory_space<vmem>>, %arg4: memref<16x32xf32, #tpu.memory_space<vmem>>, %arg5: memref<1x32xf32, #tpu.memory_space<vmem>>, %arg6: memref<1x32xf32, #tpu.memory_space<vmem>>, %arg7: memref<1xf32, #tpu.memory_space<smem>>, %arg8: memref<128x1xf32, #tpu.memory_space<vmem>>) attributes {dimension_semantics = [#tpu.dimension_semantics<parallel>], iteration_bounds = array<i64: 1>, scalar_prefetch = 0 : i64, scratch_operands = 0 : i64, tpu.core_type = #tpu.core_type<tc>, window_params = [{transform_indices = @transform_0, window_bounds = array<i64: 128, 16>}, {transform_indices = @transform_1, window_bounds = array<i64: 128, 16>}, {pipeline_mode = #tpu.pipeline_mode<synchronous>, transform_indices = @transform_2, window_bounds = array<i64: 16, 32>}, {pipeline_mode = #tpu.pipeline_mode<synchronous>, transform_indices = @transform_3, window_bounds = array<i64: 16, 32>}, {pipeline_mode = #tpu.pipeline_mode<synchronous>, transform_indices = @transform_4, window_bounds = array<i64: 1, 32>}, {pipeline_mode = #tpu.pipeline_mode<synchronous>, transform_indices = @transform_5, window_bounds = array<i64: 1, 32>}, {transform_indices = @transform_6, window_bounds = array<i64: 1>}, {transform_indices = @transform_7, window_bounds = array<i64: 128, 1>}]} {
    %c0 = arith.constant 0 : index
    %c0_0 = arith.constant 0 : index
    %0 = vector.load %arg1[%c0, %c0_0] : memref<128x16xf32, #tpu.memory_space<vmem>>, vector<128x16xf32>
    %c0_1 = arith.constant 0 : index
    %c0_2 = arith.constant 0 : index
    %1 = vector.load %arg3[%c0_1, %c0_2] : memref<16x32xf32, #tpu.memory_space<vmem>>, vector<16x32xf32>
    %cst = arith.constant dense<0.000000e+00> : vector<128x32xf32>
    %2 = tpu.matmul %0, %1, %cst {dimension_numbers = #tpu.dot_dimension_numbers<[1], [0], [0], [1], [0, 0, 1, 1], [], []>} : vector<128x16xf32>, vector<16x32xf32>, vector<128x32xf32> -> vector<128x32xf32>
    %c0_3 = arith.constant 0 : index
    %c0_4 = arith.constant 0 : index
    %3 = vector.load %arg2[%c0_3, %c0_4] : memref<128x16xf32, #tpu.memory_space<vmem>>, vector<128x16xf32>
    %c0_5 = arith.constant 0 : index
    %c0_6 = arith.constant 0 : index
    %4 = vector.load %arg4[%c0_5, %c0_6] : memref<16x32xf32, #tpu.memory_space<vmem>>, vector<16x32xf32>
    %cst_7 = arith.constant dense<0.000000e+00> : vector<128x32xf32>
    %5 = tpu.matmul %3, %4, %cst_7 {dimension_numbers = #tpu.dot_dimension_numbers<[1], [0], [0], [1], [0, 0, 1, 1], [], []>} : vector<128x16xf32>, vector<16x32xf32>, vector<128x32xf32> -> vector<128x32xf32>
    %6 = arith.addf %2, %5 : vector<128x32xf32>
    %c0_8 = arith.constant 0 : index
    %c0_9 = arith.constant 0 : index
    %7 = vector.load %arg5[%c0_8, %c0_9] : memref<1x32xf32, #tpu.memory_space<vmem>>, vector<1x32xf32>
    %8 = vector.broadcast %7 : vector<1x32xf32> to vector<128x32xf32>
    %9 = arith.addf %6, %8 : vector<128x32xf32>
    %cst_10 = arith.constant 0.000000e+00 : f32
    %10 = vector.broadcast %cst_10 : f32 to vector<128x32xf32>
    %11 = arith.maximumf %9, %10 : vector<128x32xf32>
    %c0_11 = arith.constant 0 : index
    %c0_12 = arith.constant 0 : index
    %12 = vector.load %arg6[%c0_11, %c0_12] : memref<1x32xf32, #tpu.memory_space<vmem>>, vector<1x32xf32>
    %13 = vector.broadcast %12 : vector<1x32xf32> to vector<128x32xf32>
    %14 = arith.mulf %11, %13 : vector<128x32xf32>
    %cst_13 = arith.constant dense<0.000000e+00> : vector<128xf32>
    %15 = vector.multi_reduction <add>, %14, %cst_13 [1] : vector<128x32xf32> to vector<128xf32>
    %16 = vector.shape_cast %15 : vector<128xf32> to vector<128x1xf32>
    %c0_14 = arith.constant 0 : index
    %17 = memref.load %arg7[%c0_14] : memref<1xf32, #tpu.memory_space<smem>>
    %18 = vector.broadcast %17 : f32 to vector<128x1xf32>
    %19 = arith.addf %16, %18 : vector<128x1xf32>
    %c0_15 = arith.constant 0 : index
    %c0_16 = arith.constant 0 : index
    %20 = vector.load %arg8[%c0_15, %c0_16] : memref<128x1xf32, #tpu.memory_space<vmem>>, vector<128x1xf32>
    tpu.vector_store %arg8[%c0_15, %c0_16], %19 {strides = array<i32>} : memref<128x1xf32, #tpu.memory_space<vmem>>, vector<128x1xf32>,
    return
  }
  func.func @transform_0(%arg0: i32) -> (i32, i32) {
    %c0_i32 = arith.constant 0 : i32
    %c0_i32_0 = arith.constant 0 : i32
    return %arg0, %c0_i32 : i32, i32
  }
  func.func @transform_1(%arg0: i32) -> (i32, i32) {
    %c0_i32 = arith.constant 0 : i32
    %c0_i32_0 = arith.constant 0 : i32
    return %arg0, %c0_i32 : i32, i32
  }
  func.func @transform_2(%arg0: i32) -> (i32, i32) {
    %c0_i32 = arith.constant 0 : i32
    %c0_i32_0 = arith.constant 0 : i32
    %c0_i32_1 = arith.constant 0 : i32
    return %c0_i32, %c0_i32_0 : i32, i32
  }
  func.func @transform_3(%arg0: i32) -> (i32, i32) {
    %c0_i32 = arith.constant 0 : i32
    %c0_i32_0 = arith.constant 0 : i32
    %c0_i32_1 = arith.constant 0 : i32
    return %c0_i32, %c0_i32_0 : i32, i32
  }
  func.func @transform_4(%arg0: i32) -> (i32, i32) {
    %c0_i32 = arith.constant 0 : i32
    %c0_i32_0 = arith.constant 0 : i32
    %c0_i32_1 = arith.constant 0 : i32
    return %c0_i32, %c0_i32_0 : i32, i32
  }
  func.func @transform_5(%arg0: i32) -> (i32, i32) {
    %c0_i32 = arith.constant 0 : i32
    %c0_i32_0 = arith.constant 0 : i32
    %c0_i32_1 = arith.constant 0 : i32
    return %c0_i32, %c0_i32_0 : i32, i32
  }
  func.func @transform_6(%arg0: i32) -> i32 {
    %c0_i32 = arith.constant 0 : i32
    %c0_i32_0 = arith.constant 0 : i32
    return %c0_i32 : i32
  }
  func.func @transform_7(%arg0: i32) -> (i32, i32) {
    %c0_i32 = arith.constant 0 : i32
    %c0_i32_0 = arith.constant 0 : i32
    return %arg0, %c0_i32 : i32, i32
  }
}

</mosaic_0001>

<llo_original>
// kernel: tpu_custom_call.1
$region0: #{tpu_custom_call.1}
  #allocation0 [shape = 'u32[]', space=smem, size = 0x4, offset = 0x4, fixed_abs, tag = 'smem constant byte address 0x4 - core index']
  #allocation1 [shape = 'u32[72,128]{1,0:T(1,128)}', space=vmem, size = 0x9000, scoped, tag = 'internal scratch']
  #allocation2 [shape = 'f32[1]{0:T(128)S(6)}', space=smem, size = 0x200, scoped, tag = 'scoped memory for tpu_custom_call.1']
  %s0 = inlined_call_operand.vmem [shape: f32[128,16], index: 0, kind: input, shape index: {}]
  %s1 = inlined_call_operand.vmem [shape: f32[128,16], index: 1, kind: input, shape index: {}]
  %s2 = inlined_call_operand.vmem [shape: f32[16,32], index: 2, kind: input, shape index: {}]
  %s3 = inlined_call_operand.vmem [shape: f32[16,32], index: 3, kind: input, shape index: {}]
  %s4 = inlined_call_operand.vmem [shape: f32[1,32], index: 4, kind: input, shape index: {}]
  %s5 = inlined_call_operand.vmem [shape: f32[1,32], index: 5, kind: input, shape index: {}]
  %s6 = inlined_call_operand.<no memory space> [shape: f32[1], index: 6, kind: input, shape index: {}]
  %s7 = inlined_call_operand.vmem [shape: f32[128,1], index: 7, kind: output, shape index: {}]
  %s8 = sld [smem:[#allocation0]]
  $region38: #{tpu_custom_call.1} parent=0
    _
  %s10 = ssub.s32 1, %s8
  %s11 = scalar_select 0, %s10, %s8
  %12 = sst [smem:[#allocation2]] %s6
  // Predicated region
  $region2: #{tpu_custom_call.1} parent=0 // pred_check
    _
  $region3: #{tpu_custom_call.1} parent=0 // pred_check_branch
    %14 = sbr.rel (0) target = $region5
  $region4: #{tpu_custom_call.1} parent=0 // pred_region
    _
  $region5: #{tpu_custom_call.1} parent=0 // pred_fallthru
    _
  // Predicated region
  $region6: #{tpu_custom_call.1} parent=0 // pred_check
    _
  $region7: #{tpu_custom_call.1} parent=0 // pred_check_branch
    %16 = sbr.rel (0) target = $region9
  $region8: #{tpu_custom_call.1} parent=0 // pred_region
    _
  $region9: #{tpu_custom_call.1} parent=0 // pred_fallthru
    _
  // Predicated region
  $region10: #{tpu_custom_call.1} parent=0 // pred_check
    _
  $region11: #{tpu_custom_call.1} parent=0 // pred_check_branch
    %18 = sbr.rel (0) target = $region13
  $region12: #{tpu_custom_call.1} parent=0 // pred_region
    _
  $region13: #{tpu_custom_call.1} parent=0 // pred_fallthru
    _
  // Predicated region
  $region14: #{tpu_custom_call.1} parent=0 // pred_check
    _
  $region15: #{tpu_custom_call.1} parent=0 // pred_check_branch
    %20 = sbr.rel (0) target = $region17
  $region16: #{tpu_custom_call.1} parent=0 // pred_region
    _
  $region17: #{tpu_custom_call.1} parent=0 // pred_fallthru
    _
  // Predicated region
  $region18: #{tpu_custom_call.1} parent=0 // pred_check
    _
  $region19: #{tpu_custom_call.1} parent=0 // pred_check_branch
    %22 = sbr.rel (0) target = $region21
  $region20: #{tpu_custom_call.1} parent=0 // pred_region
    _
  $region21: #{tpu_custom_call.1} parent=0 // pred_fallthru
    _
  // Predicated region
  $region22: #{tpu_custom_call.1} parent=0 // pred_check
    _
  $region23: #{tpu_custom_call.1} parent=0 // pred_check_branch
    %24 = sbr.rel (0) target = $region25
  $region24: #{tpu_custom_call.1} parent=0 // pred_region
    _
  $region25: #{tpu_custom_call.1} parent=0 // pred_fallthru
    _
  // Predicated region
  $region26: #{tpu_custom_call.1} parent=0 // pred_check
    _
  $region27: #{tpu_custom_call.1} parent=0 // pred_check_branch
    %26 = sbr.rel (0) target = $region29
  $region28: #{tpu_custom_call.1} parent=0 // pred_region
    _
  $region29: #{tpu_custom_call.1} parent=0 // pred_fallthru
    _
  %v27 = vld [vmem:[%s0] sm:$0xff]
  %v28 = vld [vmem:[%s0 + $0x8] sm:$0xff]
  %v29 = vld [vmem:[%s0 + $0x10] sm:$0xff]
  %v30 = vld [vmem:[%s0 + $0x18] sm:$0xff]
  %v31 = vld [vmem:[%s0 + $0x20] sm:$0xff]
  %v32 = vld [vmem:[%s0 + $0x28] sm:$0xff]
  %v33 = vld [vmem:[%s0 + $0x30] sm:$0xff]
  %v34 = vld [vmem:[%s0 + $0x38] sm:$0xff]
  %v35 = vld [vmem:[%s0 + $0x40] sm:$0xff]
  %v36 = vld [vmem:[%s0 + $0x48] sm:$0xff]
  %v37 = vld [vmem:[%s0 + $0x50] sm:$0xff]
  %v38 = vld [vmem:[%s0 + $0x58] sm:$0xff]
  %v39 = vld [vmem:[%s0 + $0x60] sm:$0xff]
  %v40 = vld [vmem:[%s0 + $0x68] sm:$0xff]
  %v41 = vld [vmem:[%s0 + $0x70] sm:$0xff]
  %v42 = vld [vmem:[%s0 + $0x78] sm:$0xff]
  %v43 = vld [vmem:[%s2] sm:$0xff]
  %v44 = vld [vmem:[%s2 + $0x8] sm:$0xff]
  %v45 = vld [vmem:[%s1] sm:$0xff]
  %v46 = vld [vmem:[%s1 + $0x8] sm:$0xff]
  %v47 = vld [vmem:[%s1 + $0x10] sm:$0xff]
  %v48 = vld [vmem:[%s1 + $0x18] sm:$0xff]
  %v49 = vld [vmem:[%s1 + $0x20] sm:$0xff]
  %v50 = vld [vmem:[%s1 + $0x28] sm:$0xff]
  %v51 = vld [vmem:[%s1 + $0x30] sm:$0xff]
  %v52 = vld [vmem:[%s1 + $0x38] sm:$0xff]
  %v53 = vld [vmem:[%s1 + $0x40] sm:$0xff]
  %v54 = vld [vmem:[%s1 + $0x48] sm:$0xff]
  %v55 = vld [vmem:[%s1 + $0x50] sm:$0xff]
  %v56 = vld [vmem:[%s1 + $0x58] sm:$0xff]
  %v57 = vld [vmem:[%s1 + $0x60] sm:$0xff]
  %v58 = vld [vmem:[%s1 + $0x68] sm:$0xff]
  %v59 = vld [vmem:[%s1 + $0x70] sm:$0xff]
  %v60 = vld [vmem:[%s1 + $0x78] sm:$0xff]
  %v61 = vld [vmem:[%s3] sm:$0xff]
  %v62 = vld [vmem:[%s3 + $0x8] sm:$0xff]
  %vm63 = vcmask 130048
  %v65 = vsel %vm63, %v45, 0
  %v68 = vsel %vm63, %v46, 0
  %v71 = vsel %vm63, %v47, 0
  %v74 = vsel %vm63, %v48, 0
  %v77 = vsel %vm63, %v49, 0
  %v80 = vsel %vm63, %v50, 0
  %v83 = vsel %vm63, %v51, 0
  %v86 = vsel %vm63, %v52, 0
  %v89 = vsel %vm63, %v53, 0
  %v92 = vsel %vm63, %v54, 0
  %v95 = vsel %vm63, %v55, 0
  %v98 = vsel %vm63, %v56, 0
  %v101 = vsel %vm63, %v57, 0
  %v104 = vsel %vm63, %v58, 0
  %v107 = vsel %vm63, %v59, 0
  %v110 = vsel %vm63, %v60, 0
  %112 = vmatpush.msra.mxu0 0.0
  %113 = vmatpush.msra.mxu0 0.0
  %114 = vmatpush.msra.mxu0 0.0
  %115 = vmatpush.msra.mxu0 0.0
  %116 = vmatpush.msra.mxu0 0.0
  %117 = vmatpush.msra.mxu0 0.0
  %118 = vmatpush.msra.mxu0 0.0
  %119 = vmatpush.msra.mxu0 0.0
  %120 = vmatpush.msra.mxu0 0.0
  %121 = vmatpush.msra.mxu0 0.0
  %122 = vmatpush.msra.mxu0 0.0
  %123 = vmatpush.msra.mxu0 0.0
  %124 = vmatpush.msra.mxu0 0.0
  %125 = vmatpush.msra.mxu0 0.0
  %126 = vmatpush.msra.mxu0 %v62
  %127 = vmatpush.msra.mxu0 %v61
  %128 = vmatmul.f32.gmra.mxu0 %v65
  %v129 = vpop.f32.mrf.mxu0
  %v130 = vadd.f32 0.0, %v129
  %131 = vmatmul.f32.gmra.mxu0 %v68
  %v132 = vpop.f32.mrf.mxu0
  %v133 = vadd.f32 0.0, %v132
  %134 = vmatmul.f32.gmra.mxu0 %v71
  %v135 = vpop.f32.mrf.mxu0
  %v136 = vadd.f32 0.0, %v135
  %137 = vmatmul.f32.gmra.mxu0 %v74
  %v138 = vpop.f32.mrf.mxu0
  %v139 = vadd.f32 0.0, %v138
  %140 = vmatmul.f32.gmra.mxu0 %v77
  %v141 = vpop.f32.mrf.mxu0
  %v142 = vadd.f32 0.0, %v141
  %143 = vmatmul.f32.gmra.mxu0 %v80
  %v144 = vpop.f32.mrf.mxu0
  %v145 = vadd.f32 0.0, %v144
  %146 = vmatmul.f32.gmra.mxu0 %v83
  %v147 = vpop.f32.mrf.mxu0
  %v148 = vadd.f32 0.0, %v147
  %149 = vmatmul.f32.gmra.mxu0 %v86
  %v150 = vpop.f32.mrf.mxu0
  %v151 = vadd.f32 0.0, %v150
  %152 = vmatmul.f32.gmra.mxu0 %v89
  %v153 = vpop.f32.mrf.mxu0
  %v154 = vadd.f32 0.0, %v153
  %155 = vmatmul.f32.gmra.mxu0 %v92
  %v156 = vpop.f32.mrf.mxu0
  %v157 = vadd.f32 0.0, %v156
  %158 = vmatmul.f32.gmra.mxu0 %v95
  %v159 = vpop.f32.mrf.mxu0
  %v160 = vadd.f32 0.0, %v159
  %161 = vmatmul.f32.gmra.mxu0 %v98
  %v162 = vpop.f32.mrf.mxu0
  %v163 = vadd.f32 0.0, %v162
  %164 = vmatmul.f32.gmra.mxu0 %v101
  %v165 = vpop.f32.mrf.mxu0
  %v166 = vadd.f32 0.0, %v165
  %167 = vmatmul.f32.gmra.mxu0 %v104
  %v168 = vpop.f32.mrf.mxu0
  %v169 = vadd.f32 0.0, %v168
  %170 = vmatmul.f32.gmra.mxu0 %v107
  %v171 = vpop.f32.mrf.mxu0
  %v172 = vadd.f32 0.0, %v171
  %173 = vmatmul.f32.gmra.mxu0 %v110
  %v174 = vpop.f32.mrf.mxu0
  %v175 = vadd.f32 0.0, %v174
  %176 = vdwg.mxu0
  %v178 = vsel %vm63, %v27, 0
  %v181 = vsel %vm63, %v28, 0
  %v184 = vsel %vm63, %v29, 0
  %v187 = vsel %vm63, %v30, 0
  %v190 = vsel %vm63, %v31, 0
  %v193 = vsel %vm63, %v32, 0
  %v196 = vsel %vm63, %v33, 0
  %v199 = vsel %vm63, %v34, 0
  %v202 = vsel %vm63, %v35, 0
  %v205 = vsel %vm63, %v36, 0
  %v208 = vsel %vm63, %v37, 0
  %v211 = vsel %vm63, %v38, 0
  %v214 = vsel %vm63, %v39, 0
  %v217 = vsel %vm63, %v40, 0
  %v220 = vsel %vm63, %v41, 0
  %v223 = vsel %vm63, %v42, 0
  %225 = vmatpush.msra.mxu0 0.0
  %226 = vmatpush.msra.mxu0 0.0
  %227 = vmatpush.msra.mxu0 0.0
  %228 = vmatpush.msra.mxu0 0.0
  %229 = vmatpush.msra.mxu0 0.0
  %230 = vmatpush.msra.mxu0 0.0
  %231 = vmatpush.msra.mxu0 0.0
  %232 = vmatpush.msra.mxu0 0.0
  %233 = vmatpush.msra.mxu0 0.0
  %234 = vmatpush.msra.mxu0 0.0
  %235 = vmatpush.msra.mxu0 0.0
  %236 = vmatpush.msra.mxu0 0.0
  %237 = vmatpush.msra.mxu0 0.0
  %238 = vmatpush.msra.mxu0 0.0
  %239 = vmatpush.msra.mxu0 %v44
  %240 = vmatpush.msra.mxu0 %v43
  %241 = vmatmul.f32.gmra.mxu0 %v178
  %v242 = vpop.f32.mrf.mxu0
  %v243 = vadd.f32 %v130, %v242
  %244 = vmatmul.f32.gmra.mxu0 %v181
  %v245 = vpop.f32.mrf.mxu0
  %v246 = vadd.f32 %v133, %v245
  %247 = vmatmul.f32.gmra.mxu0 %v184
  %v248 = vpop.f32.mrf.mxu0
  %v249 = vadd.f32 %v136, %v248
  %250 = vmatmul.f32.gmra.mxu0 %v187
  %v251 = vpop.f32.mrf.mxu0
  %v252 = vadd.f32 %v139, %v251
  %253 = vmatmul.f32.gmra.mxu0 %v190
  %v254 = vpop.f32.mrf.mxu0
  %v255 = vadd.f32 %v142, %v254
  %256 = vmatmul.f32.gmra.mxu0 %v193
  %v257 = vpop.f32.mrf.mxu0
  %v258 = vadd.f32 %v145, %v257
  %259 = vmatmul.f32.gmra.mxu0 %v196
  %v260 = vpop.f32.mrf.mxu0
  %v261 = vadd.f32 %v148, %v260
  %262 = vmatmul.f32.gmra.mxu0 %v199
  %v263 = vpop.f32.mrf.mxu0
  %v264 = vadd.f32 %v151, %v263
  %265 = vmatmul.f32.gmra.mxu0 %v202
  %v266 = vpop.f32.mrf.mxu0
  %v267 = vadd.f32 %v154, %v266
  %268 = vmatmul.f32.gmra.mxu0 %v205
  %v269 = vpop.f32.mrf.mxu0
  %v270 = vadd.f32 %v157, %v269
  %271 = vmatmul.f32.gmra.mxu0 %v208
  %v272 = vpop.f32.mrf.mxu0
  %v273 = vadd.f32 %v160, %v272
  %274 = vmatmul.f32.gmra.mxu0 %v211
  %v275 = vpop.f32.mrf.mxu0
  %v276 = vadd.f32 %v163, %v275
  %277 = vmatmul.f32.gmra.mxu0 %v214
  %v278 = vpop.f32.mrf.mxu0
  %v279 = vadd.f32 %v166, %v278
  %280 = vmatmul.f32.gmra.mxu0 %v217
  %v281 = vpop.f32.mrf.mxu0
  %v282 = vadd.f32 %v169, %v281
  %283 = vmatmul.f32.gmra.mxu0 %v220
  %v284 = vpop.f32.mrf.mxu0
  %v285 = vadd.f32 %v172, %v284
  %286 = vmatmul.f32.gmra.mxu0 %v223
  %v287 = vpop.f32.mrf.mxu0
  %v288 = vadd.f32 %v175, %v287
  %289 = vdwg.mxu0
  %v290 = vld [vmem:[%s4] sm:$0x1]
  %v292 = vperm.slane %v290, 0
  %v294 = vadd.f32 %v243, %v292
  %v295 = vadd.f32 %v246, %v292
  %v296 = vadd.f32 %v249, %v292
  %v297 = vadd.f32 %v252, %v292
  %v298 = vadd.f32 %v255, %v292
  %v299 = vadd.f32 %v258, %v292
  %v300 = vadd.f32 %v261, %v292
  %v301 = vadd.f32 %v264, %v292
  %v302 = vadd.f32 %v267, %v292
  %v303 = vadd.f32 %v270, %v292
  %v304 = vadd.f32 %v273, %v292
  %v305 = vadd.f32 %v276, %v292
  %v306 = vadd.f32 %v279, %v292
  %v307 = vadd.f32 %v282, %v292
  %v308 = vadd.f32 %v285, %v292
  %v309 = vadd.f32 %v288, %v292
  %v310 = vmax.f32 %v294, 0.0
  %v311 = vmax.f32 %v295, 0.0
  %v312 = vmax.f32 %v296, 0.0
  %v313 = vmax.f32 %v297, 0.0
  %v314 = vmax.f32 %v298, 0.0
  %v315 = vmax.f32 %v299, 0.0
  %v316 = vmax.f32 %v300, 0.0
  %v317 = vmax.f32 %v301, 0.0
  %v318 = vmax.f32 %v302, 0.0
  %v319 = vmax.f32 %v303, 0.0
  %v320 = vmax.f32 %v304, 0.0
  %v321 = vmax.f32 %v305, 0.0
  %v322 = vmax.f32 %v306, 0.0
  %v323 = vmax.f32 %v307, 0.0
  %v324 = vmax.f32 %v308, 0.0
  %v325 = vmax.f32 %v309, 0.0
  %v326 = vld [vmem:[%s5] sm:$0x1]
  %v328 = vperm.slane %v326, 0
  %v330 = vmul.f32 %v310, %v328
  %v331 = vmul.f32 %v311, %v328
  %v332 = vmul.f32 %v312, %v328
  %v333 = vmul.f32 %v313, %v328
  %v334 = vmul.f32 %v314, %v328
  %v335 = vmul.f32 %v315, %v328
  %v336 = vmul.f32 %v316, %v328
  %v337 = vmul.f32 %v317, %v328
  %v338 = vmul.f32 %v318, %v328
  %v339 = vmul.f32 %v319, %v328
  %v340 = vmul.f32 %v320, %v328
  %v341 = vmul.f32 %v321, %v328
  %v342 = vmul.f32 %v322, %v328
  %v343 = vmul.f32 %v323, %v328
  %v344 = vmul.f32 %v324, %v328
  %v345 = vmul.f32 %v325, %v328
  %vm346 = vcmask 261120
  %v347 = vsel %vm346, %v330, 0.0
  %348 = vadd.xlane.f32.xlu0 %v347
  %v349 = vpop.xlane.xlu0 %348
  %v350 = vsel %vm346, %v331, 0.0
  %351 = vadd.xlane.f32.xlu0 %v350
  %v352 = vpop.xlane.xlu0 %351
  %v353 = vsel %vm346, %v332, 0.0
  %354 = vadd.xlane.f32.xlu0 %v353
  %v355 = vpop.xlane.xlu0 %354
  %v356 = vsel %vm346, %v333, 0.0
  %357 = vadd.xlane.f32.xlu0 %v356
  %v358 = vpop.xlane.xlu0 %357
  %v359 = vsel %vm346, %v334, 0.0
  %360 = vadd.xlane.f32.xlu0 %v359
  %v361 = vpop.xlane.xlu0 %360
  %v362 = vsel %vm346, %v335, 0.0
  %363 = vadd.xlane.f32.xlu0 %v362
  %v364 = vpop.xlane.xlu0 %363
  %v365 = vsel %vm346, %v336, 0.0
  %366 = vadd.xlane.f32.xlu0 %v365
  %v367 = vpop.xlane.xlu0 %366
  %v368 = vsel %vm346, %v337, 0.0
  %369 = vadd.xlane.f32.xlu0 %v368
  %v370 = vpop.xlane.xlu0 %369
  %v371 = vsel %vm346, %v338, 0.0
  %372 = vadd.xlane.f32.xlu0 %v371
  %v373 = vpop.xlane.xlu0 %372
  %v374 = vsel %vm346, %v339, 0.0
  %375 = vadd.xlane.f32.xlu0 %v374
  %v376 = vpop.xlane.xlu0 %375
  %v377 = vsel %vm346, %v340, 0.0
  %378 = vadd.xlane.f32.xlu0 %v377
  %v379 = vpop.xlane.xlu0 %378
  %v380 = vsel %vm346, %v341, 0.0
  %381 = vadd.xlane.f32.xlu0 %v380
  %v382 = vpop.xlane.xlu0 %381
  %v383 = vsel %vm346, %v342, 0.0
  %384 = vadd.xlane.f32.xlu0 %v383
  %v385 = vpop.xlane.xlu0 %384
  %v386 = vsel %vm346, %v343, 0.0
  %387 = vadd.xlane.f32.xlu0 %v386
  %v388 = vpop.xlane.xlu0 %387
  %v389 = vsel %vm346, %v344, 0.0
  %390 = vadd.xlane.f32.xlu0 %v389
  %v391 = vpop.xlane.xlu0 %390
  %v392 = vsel %vm346, %v345, 0.0
  %393 = vadd.xlane.f32.xlu0 %v392
  %v394 = vpop.xlane.xlu0 %393
  %s395 = sld [smem:[#allocation2]]
  %v396 = vstv %s395
  %v397 = vadd.f32 %v349, %v396
  %v398 = vadd.f32 %v352, %v396
  %v399 = vadd.f32 %v355, %v396
  %v400 = vadd.f32 %v358, %v396
  %v401 = vadd.f32 %v361, %v396
  %v402 = vadd.f32 %v364, %v396
  %v403 = vadd.f32 %v367, %v396
  %v404 = vadd.f32 %v370, %v396
  %v405 = vadd.f32 %v373, %v396
  %v406 = vadd.f32 %v376, %v396
  %v407 = vadd.f32 %v379, %v396
  %v408 = vadd.f32 %v382, %v396
  %v409 = vadd.f32 %v385, %v396
  %v410 = vadd.f32 %v388, %v396
  %v411 = vadd.f32 %v391, %v396
  %v412 = vadd.f32 %v394, %v396
  %vm413 = vcmask 7168
  %414 = vst.msk [vmem:[%s7] sm:$0xff] %vm413, %v397
  %415 = vst.msk [vmem:[%s7 + $0x8] sm:$0xff] %vm413, %v398
  %416 = vst.msk [vmem:[%s7 + $0x10] sm:$0xff] %vm413, %v399
  %417 = vst.msk [vmem:[%s7 + $0x18] sm:$0xff] %vm413, %v400
  %418 = vst.msk [vmem:[%s7 + $0x20] sm:$0xff] %vm413, %v401
  %419 = vst.msk [vmem:[%s7 + $0x28] sm:$0xff] %vm413, %v402
  %420 = vst.msk [vmem:[%s7 + $0x30] sm:$0xff] %vm413, %v403
  %421 = vst.msk [vmem:[%s7 + $0x38] sm:$0xff] %vm413, %v404
  %422 = vst.msk [vmem:[%s7 + $0x40] sm:$0xff] %vm413, %v405
  %423 = vst.msk [vmem:[%s7 + $0x48] sm:$0xff] %vm413, %v406
  %424 = vst.msk [vmem:[%s7 + $0x50] sm:$0xff] %vm413, %v407
  %425 = vst.msk [vmem:[%s7 + $0x58] sm:$0xff] %vm413, %v408
  %426 = vst.msk [vmem:[%s7 + $0x60] sm:$0xff] %vm413, %v409
  %427 = vst.msk [vmem:[%s7 + $0x68] sm:$0xff] %vm413, %v410
  %428 = vst.msk [vmem:[%s7 + $0x70] sm:$0xff] %vm413, %v411
  %429 = vst.msk [vmem:[%s7 + $0x78] sm:$0xff] %vm413, %v412
  // Predicated region
  $region30: #{tpu_custom_call.1} parent=0 // pred_check
    _
  $region31: #{tpu_custom_call.1} parent=0 // pred_check_branch
    %431 = sbr.rel (0) target = $region33
  $region32: #{tpu_custom_call.1} parent=0 // pred_region
    _
  $region33: #{tpu_custom_call.1} parent=0 // pred_fallthru
    _
  // Predicated region
  $region34: #{tpu_custom_call.1} parent=0 // pred_check
    _
  $region35: #{tpu_custom_call.1} parent=0 // pred_check_branch
    %433 = sbr.rel (0) target = $region37
  $region36: #{tpu_custom_call.1} parent=0 // pred_region
    _
  $region37: #{tpu_custom_call.1} parent=0 // pred_fallthru
    _

</llo_original>
